<compile_context>
chip_gen: v6e
topology: v6e:2x2x1
jax: 0.10.0
libtpu: 0.0.40
codegen_flags: <defaults>
</compile_context>

<pallas_src>
import functools

import jax
import jax.numpy as jnp
from jax.experimental import pallas as pl
from jax.experimental.pallas import tpu as pltpu


def _net_map2_kernel(x_ref, w_ref, b_ref, o_ref, *, n_categories):
    # x_ref: (D, TILE_N)      features on sublanes, batch on lanes
    # w_ref: (G*8, D)         fused, 8-row (sublane) aligned groups
    # b_ref: (G*8, 1)
    # o_ref: (3, TILE_N)
    nc = n_categories
    x = x_ref[...]
    # Single fused MXU matmul for both Linear layers, f32 accumulate.
    # Bias add: one lane-broadcast + add over (G*8, TILE_N), hidden under DMA.
    z = jnp.dot(w_ref[...], x, preferred_element_type=jnp.float32) + b_ref[...]

    if nc == 2:
        # Algebraic fold of the 2-category softmax (weights prepared in wrapper):
        #   out = sigmoid(zA) * zB + zC
        # All slices are 8-row aligned; padded rows are exactly zero and harmless.
        zA = z[0:8, :]
        zB = z[8:16, :]
        zC = z[16:24, :]
        out = jax.nn.sigmoid(zA) * zB + zC
    else:
        # General softmax over categories; group c's logits at rows [8c, 8c+8),
        # its thetas at rows [8(nc+c), 8(nc+c)+8).  Rowwise-elementwise only —
        # padded rows compute zeros and never mix with the real rows.
        lg = [z[c * 8:(c + 1) * 8, :] for c in range(nc)]
        th = [z[(nc + c) * 8:(nc + c + 1) * 8, :] for c in range(nc)]
        m = lg[0]
        for c in range(1, nc):
            m = jnp.maximum(m, lg[c])
        den = jnp.zeros_like(m)
        num = jnp.zeros_like(m)
        for c in range(nc):
            e = jnp.exp(lg[c] - m)
            den = den + e
            num = num + e * th[c]
        out = num / den            # exact; still fully hidden under HBM DMA

    # Aligned offset-0 slice of the first 3 sublanes -> lane-dense store.
    o_ref[...] = out[:3, :].astype(o_ref.dtype)


def _prepare_params(wc, bc, wl, bl, n_categories):
    """Fuse classifier+linear weights into sublane-aligned (8-row) groups."""
    nc = n_categories
    f32 = jnp.float32
    wc = jnp.asarray(wc, f32)
    wl = jnp.asarray(wl, f32)
    bc = jnp.asarray(bc, f32).reshape(-1)
    bl = jnp.asarray(bl, f32).reshape(-1)
    d = wc.shape[1]

    def pad8(a2d):                      # (3, k) -> (8, k), zero-padded
        return jnp.zeros((8, a2d.shape[1]), f32).at[: a2d.shape[0]].set(a2d)

    if nc == 2:
        # Per slot s (rows s*2 + cat): out = sigmoid(l0-l1)*(t0-t1) + t1.
        groups_w = [wc[0::2] - wc[1::2], wl[0::2] - wl[1::2], wl[1::2]]
        groups_b = [bc[0::2] - bc[1::2], bl[0::2] - bl[1::2], bl[1::2]]
    else:
        # Category-major groups: rows of category c are wc[c::nc] (slots 0..2).
        groups_w = [wc[c::nc] for c in range(nc)] + [wl[c::nc] for c in range(nc)]
        groups_b = [bc[c::nc] for c in range(nc)] + [bl[c::nc] for c in range(nc)]

    w_all = jnp.concatenate([pad8(g) for g in groups_w], axis=0)               # (G*8, D)
    b_all = jnp.concatenate([pad8(g.reshape(-1, 1)) for g in groups_b], axis=0)  # (G*8, 1)
    assert w_all.shape[1] == d
    return w_all, b_all


def _hw_defaults():
    """Tile cap / VMEM limit: safe for v7x (64 MiB VMEM), bigger on v5e/v6e."""
    tile_cap, vmem_limit = 65536, 32 * 1024 * 1024
    try:
        info = pltpu.get_tpu_info()
        vmem_bytes = getattr(info, "vmem_capacity_bytes", 0) or 0
        if vmem_bytes >= 100 * 1024 * 1024:        # 128 MiB VMEM parts (v5e/v6e)
            tile_cap, vmem_limit = 131072, 64 * 1024 * 1024
    except Exception:
        pass
    return tile_cap, vmem_limit


def _select_tiling(n, tile_cap):
    """Balanced lane tiles: >=2 grid steps when possible, padding < steps*128."""
    lanes = max(128, pl.cdiv(n, 128) * 128)
    min_steps = 2 if lanes >= 2 * 128 else 1       # keep both v7x TCs busy
    steps = max(min_steps, pl.cdiv(lanes, tile_cap))
    tile = pl.cdiv(lanes // 128, steps) * 128
    n_pad = steps * tile
    return tile, n_pad, steps


def net_map2_forward_lane_major(x_lm, wc, bc, wl, bl, *, n_categories=2,
                                tile_cap=None, vmem_limit_bytes=None):
    """Lane-major forward: x_lm is (D, N); returns (3, N).  No wrapper transposes."""
    nc = n_categories
    d, n = x_lm.shape
    w_all, b_all = _prepare_params(wc, bc, wl, bl, nc)

    cap_default, vmem_default = _hw_defaults()
    tile_cap = tile_cap or cap_default
    vmem_limit_bytes = vmem_limit_bytes or vmem_default
    tile, n_pad, steps = _select_tiling(n, tile_cap)

    x_lm = jnp.asarray(x_lm, jnp.float32)
    if n_pad != n:
        x_in = jnp.zeros((d, n_pad), jnp.float32).at[:, :n].set(x_lm)
    else:
        x_in = x_lm                                # no padding pass needed

    rows = w_all.shape[0]
    flops = 2 * n_pad * d * rows + 16 * n_pad
    transcendentals = n_pad * 8 * (1 if nc == 2 else nc)
    bytes_accessed = (d * n_pad + 3 * n_pad) * 4 + (w_all.size + b_all.size) * 4

    out = pl.pallas_call(
        functools.partial(_net_map2_kernel, n_categories=nc),
        out_shape=jax.ShapeDtypeStruct((3, n_pad), jnp.float32),
        grid=(steps,),
        in_specs=[
            pl.BlockSpec((d, tile), lambda i: (0, i)),       # x tile (lane-major)
            pl.BlockSpec(w_all.shape, lambda i: (0, 0)),     # VMEM-resident weights
            pl.BlockSpec(b_all.shape, lambda i: (0, 0)),     # VMEM-resident biases
        ],
        out_specs=pl.BlockSpec((3, tile), lambda i: (0, i)),
        compiler_params=pltpu.CompilerParams(
            dimension_semantics=("parallel",),
            vmem_limit_bytes=vmem_limit_bytes,
        ),
        cost_estimate=pl.CostEstimate(
            flops=flops,
            transcendentals=transcendentals,
            bytes_accessed=bytes_accessed,
        ),
    )(x_in, w_all, b_all)

    return out if n_pad == n else out[:, :n]


def net_map2_forward(x, wc, bc, wl, bl, *, n_categories=2, **kwargs):
    """Module-convention forward: x is (N, D); returns (N, 3) float32.

    NOTE: this convenience wrapper pays one transpose pass on each side of the
    kernel.  Producers/consumers that can keep data lane-major should call
    `net_map2_forward_lane_major` directly to avoid that HBM traffic.
    """
    out_lm = net_map2_forward_lane_major(
        jnp.asarray(x, jnp.float32).T, wc, bc, wl, bl,
        n_categories=n_categories, **kwargs)
    return out_lm.T


def net_map2_reference(x, wc, bc, wl, bl, *, n_categories=2):
    n = x.shape[0]
    logits = (x @ wc.T + bc).reshape(n, 3, n_categories)
    theta = (x @ wl.T + bl).reshape(n, 3, n_categories)
    phi = jax.nn.softmax(logits, axis=2)
    return jnp.sum(phi * theta, axis=2)


if __name__ == "__main__":
    ninputs = 3
    batch = 8
    key = jax.random.PRNGKey(0)
    kx, kw = jax.random.split(key)
    x = jax.random.normal(kx, (batch, ninputs), dtype=jnp.float32)

    ok = True
    # Validate both the nc==2 sigmoid-fold fast path and the general softmax path.
    for nc in (2, 3):
        out_features = 3 * nc
        kwc, kbc, kwl, kbl, kw = jax.random.split(kw, 5)
        # PyTorch Linear layout: (out_features, in_features).
        wc = jax.random.normal(kwc, (out_features, ninputs), dtype=jnp.float32) * 0.5
        bc = jax.random.normal(kbc, (out_features,), dtype=jnp.float32) * 0.1
        wl = jax.random.normal(kwl, (out_features, ninputs), dtype=jnp.float32) * 0.5
        bl = jax.random.normal(kbl, (out_features,), dtype=jnp.float32) * 0.1

        out = net_map2_forward(x, wc, bc, wl, bl, n_categories=nc)
        out = jax.block_until_ready(out)
        ref = net_map2_reference(x, wc, bc, wl, bl, n_categories=nc)

        assert out.shape == (batch, 3)
        assert jnp.allclose(out, ref, atol=2e-5, rtol=2e-5), (nc, out, ref)
        ok = ok and True

    if ok:
        print("KERNEL_OK")
</pallas_src>

<mosaic_0001>
module attributes {stable_mosaic.version = 11 : i64} {
  func.func @_net_map2_kernel(%arg0: i32, %arg1: memref<3x128xf32, #tpu.memory_space<vmem>>, %arg2: memref<24x3xf32, #tpu.memory_space<vmem>>, %arg3: memref<24x1xf32, #tpu.memory_space<vmem>>, %arg4: memref<3x128xf32, #tpu.memory_space<vmem>>) attributes {dimension_semantics = [#tpu.dimension_semantics<parallel>], iteration_bounds = array<i64: 1>, scalar_prefetch = 0 : i64, scratch_operands = 0 : i64, tpu.core_type = #tpu.core_type<tc>, window_params = [{transform_indices = @transform_0, window_bounds = array<i64: 3, 128>}, {pipeline_mode = #tpu.pipeline_mode<synchronous>, transform_indices = @transform_1, window_bounds = array<i64: 24, 3>}, {pipeline_mode = #tpu.pipeline_mode<synchronous>, transform_indices = @transform_2, window_bounds = array<i64: 24, 1>}, {transform_indices = @transform_3, window_bounds = array<i64: 3, 128>}]} {
    %c0 = arith.constant 0 : index
    %c0_0 = arith.constant 0 : index
    %0 = vector.load %arg1[%c0, %c0_0] : memref<3x128xf32, #tpu.memory_space<vmem>>, vector<3x128xf32>
    %c0_1 = arith.constant 0 : index
    %c0_2 = arith.constant 0 : index
    %1 = vector.load %arg2[%c0_1, %c0_2] : memref<24x3xf32, #tpu.memory_space<vmem>>, vector<24x3xf32>
    %cst = arith.constant dense<0.000000e+00> : vector<24x128xf32>
    %2 = tpu.matmul %1, %0, %cst {dimension_numbers = #tpu.dot_dimension_numbers<[1], [0], [0], [1], [0, 0, 1, 1], [], []>} : vector<24x3xf32>, vector<3x128xf32>, vector<24x128xf32> -> vector<24x128xf32>
    %c0_3 = arith.constant 0 : index
    %c0_4 = arith.constant 0 : index
    %3 = vector.load %arg3[%c0_3, %c0_4] : memref<24x1xf32, #tpu.memory_space<vmem>>, vector<24x1xf32>
    %4 = vector.broadcast %3 : vector<24x1xf32> to vector<24x128xf32>
    %5 = arith.addf %2, %4 : vector<24x128xf32>
    %6 = vector.extract_strided_slice %5 {offsets = [0, 0], sizes = [8, 128], strides = [1, 1]} : vector<24x128xf32> to vector<8x128xf32>
    %7 = vector.extract_strided_slice %5 {offsets = [8, 0], sizes = [8, 128], strides = [1, 1]} : vector<24x128xf32> to vector<8x128xf32>
    %8 = vector.extract_strided_slice %5 {offsets = [16, 0], sizes = [8, 128], strides = [1, 1]} : vector<24x128xf32> to vector<8x128xf32>
    %9 = arith.negf %6 : vector<8x128xf32>
    %10 = math.exp %9 : vector<8x128xf32>
    %cst_5 = arith.constant 1.000000e+00 : f32
    %11 = vector.broadcast %cst_5 : f32 to vector<8x128xf32>
    %12 = arith.addf %11, %10 : vector<8x128xf32>
    %13 = arith.divf %11, %12 : vector<8x128xf32>
    %14 = arith.mulf %13, %7 : vector<8x128xf32>
    %15 = arith.addf %14, %8 : vector<8x128xf32>
    %16 = vector.extract_strided_slice %15 {offsets = [0, 0], sizes = [3, 128], strides = [1, 1]} : vector<8x128xf32> to vector<3x128xf32>
    %c0_6 = arith.constant 0 : index
    %c0_7 = arith.constant 0 : index
    %17 = vector.load %arg4[%c0_6, %c0_7] : memref<3x128xf32, #tpu.memory_space<vmem>>, vector<3x128xf32>
    tpu.vector_store %arg4[%c0_6, %c0_7], %16 {strides = array<i32>} : memref<3x128xf32, #tpu.memory_space<vmem>>, vector<3x128xf32>,
    return
  }
  func.func @transform_0(%arg0: i32) -> (i32, i32) {
    %c0_i32 = arith.constant 0 : i32
    %c0_i32_0 = arith.constant 0 : i32
    return %c0_i32, %arg0 : i32, i32
  }
  func.func @transform_1(%arg0: i32) -> (i32, i32) {
    %c0_i32 = arith.constant 0 : i32
    %c0_i32_0 = arith.constant 0 : i32
    %c0_i32_1 = arith.constant 0 : i32
    return %c0_i32, %c0_i32_0 : i32, i32
  }
  func.func @transform_2(%arg0: i32) -> (i32, i32) {
    %c0_i32 = arith.constant 0 : i32
    %c0_i32_0 = arith.constant 0 : i32
    %c0_i32_1 = arith.constant 0 : i32
    return %c0_i32, %c0_i32_0 : i32, i32
  }
  func.func @transform_3(%arg0: i32) -> (i32, i32) {
    %c0_i32 = arith.constant 0 : i32
    %c0_i32_0 = arith.constant 0 : i32
    return %c0_i32, %arg0 : i32, i32
  }
}

</mosaic_0001>

<llo_original>
// kernel: tpu_custom_call.1
$region0: #{tpu_custom_call.1}
  #allocation0 [shape = 'u32[]', space=smem, size = 0x4, offset = 0x4, fixed_abs, tag = 'smem constant byte address 0x4 - core index']
  #allocation1 [shape = 'u32[144,128]{1,0:T(1,128)}', space=vmem, size = 0x12000, scoped, tag = 'internal scratch']
  %s0 = inlined_call_operand.vmem [shape: f32[3,128], index: 0, kind: input, shape index: {}]
  %s1 = inlined_call_operand.vmem [shape: f32[24,3], index: 1, kind: input, shape index: {}]
  %s2 = inlined_call_operand.vmem [shape: f32[24,1], index: 2, kind: input, shape index: {}]
  %s3 = inlined_call_operand.hbm [shape: f32[3,128], index: 3, kind: output, shape index: {}]
  %s4 = sld [smem:[#allocation0]]
  $region22: #{tpu_custom_call.1} parent=0
    _
  %s6 = ssub.s32 1, %s4
  %s7 = scalar_select 0, %s6, %s4
  $region1: #{tpu_custom_call.1} parent=0
    #allocation2 [shape = 'u8[2048]{0}', space=vmem, size = 0x800, scoped, tag = 'output window, operand 0, single buffered']
    #allocation3 [shape = 's32[1]{0}', space=sflag, size = 0x4, scoped, tag = 'scoped memory for tpu_custom_call.1']
    %8 = vsyncpa [#allocation3], 0
    // Predicated region
    $region2: #{tpu_custom_call.1} parent=1 // pred_check
      _
    $region3: #{tpu_custom_call.1} parent=1 // pred_check_branch
      %10 = sbr.rel (0) target = $region5
    $region4: #{tpu_custom_call.1} parent=1 // pred_region
      _
    $region5: #{tpu_custom_call.1} parent=1 // pred_fallthru
      _
    // Predicated region
    $region6: #{tpu_custom_call.1} parent=1 // pred_check
      _
    $region7: #{tpu_custom_call.1} parent=1 // pred_check_branch
      %12 = sbr.rel (0) target = $region9
    $region8: #{tpu_custom_call.1} parent=1 // pred_region
      _
    $region9: #{tpu_custom_call.1} parent=1 // pred_fallthru
      _
    // Predicated region
    $region10: #{tpu_custom_call.1} parent=1 // pred_check
      _
    $region11: #{tpu_custom_call.1} parent=1 // pred_check_branch
      %14 = sbr.rel (0) target = $region13
    $region12: #{tpu_custom_call.1} parent=1 // pred_region
      _
    $region13: #{tpu_custom_call.1} parent=1 // pred_fallthru
      _
    %v15 = vld [vmem:[%s0] sm:$0x7]
    %v16 = vld [vmem:[%s1] sm:$0xff]
    %v17 = vld [vmem:[%s1 + $0x8] sm:$0xff]
    %v18 = vld [vmem:[%s1 + $0x10] sm:$0xff]
    %v19 = vld [vmem:[%s2] sm:$0xff]
    %v20 = vld [vmem:[%s2 + $0x8] sm:$0xff]
    %v21 = vld [vmem:[%s2 + $0x10] sm:$0xff]
    %23 = vset.pattern.permute.xlu0 0
    %24 = vperm.xlu0 %23, %v19
    %v25 = vpop.permute.xlu0 %24
    %28 = vset.pattern.permute.xlu0 0
    %29 = vperm.xlu0 %28, %v20
    %v30 = vpop.permute.xlu0 %29
    %33 = vset.pattern.permute.xlu0 0
    %34 = vperm.xlu0 %33, %v21
    %v35 = vpop.permute.xlu0 %34
    %vm37 = vcmask 23552
    %v39 = vsel %vm37, %v16, 0
    %v42 = vsel %vm37, %v17, 0
    %v45 = vsel %vm37, %v18, 0
    %vm47 = vcmask 1042432
    %v49 = vsel %vm47, %v15, 0
    %51 = vmatprep.subr.mxu0 0.0
    %52 = vmatpush1.msra.mxu0 0.0
    %53 = vmatprep.subr.mxu0 0.0
    %54 = vmatpush1.msra.mxu0 0.0
    %55 = vmatprep.subr.mxu0 0.0
    %56 = vmatpush1.msra.mxu0 0.0
    %57 = vmatprep.subr.mxu0 0.0
    %58 = vmatpush1.msra.mxu0 0.0
    %59 = vmatprep.subr.mxu0 0.0
    %60 = vmatpush1.msra.mxu0 0.0
    %61 = vmatprep.subr.mxu0 0.0
    %62 = vmatpush1.msra.mxu0 0.0
    %63 = vmatprep.subr.mxu0 0.0
    %64 = vmatpush1.msra.mxu0 0.0
    %65 = vmatprep.subr.mxu0 0.0
    %66 = vmatpush1.msra.mxu0 0.0
    %67 = vmatprep.subr.mxu0 0.0
    %68 = vmatpush1.msra.mxu0 0.0
    %69 = vmatprep.subr.mxu0 0.0
    %70 = vmatpush1.msra.mxu0 0.0
    %71 = vmatprep.subr.mxu0 0.0
    %72 = vmatpush1.msra.mxu0 0.0
    %73 = vmatprep.subr.mxu0 0.0
    %74 = vmatpush1.msra.mxu0 0.0
    %75 = vmatprep.subr.mxu0 0.0
    %76 = vmatpush1.msra.mxu0 0.0
    %77 = vmatprep.subr.mxu0 0.0
    %78 = vmatpush1.msra.mxu0 0.0
    %79 = vmatprep.subr.mxu0 0.0
    %80 = vmatpush1.msra.mxu0 0.0
    %81 = vmatprep.subr.mxu0 0.0
    %82 = vmatpush1.msra.mxu0 %v49
    %83 = vmatprep.subr.mxu0 0.0
    %84 = vmatpush2.msra.mxu0 0.0
    %85 = vmatprep.subr.mxu0 0.0
    %86 = vmatpush2.msra.mxu0 0.0
    %87 = vmatprep.subr.mxu0 0.0
    %88 = vmatpush2.msra.mxu0 0.0
    %89 = vmatprep.subr.mxu0 0.0
    %90 = vmatpush2.msra.mxu0 0.0
    %91 = vmatprep.subr.mxu0 0.0
    %92 = vmatpush2.msra.mxu0 0.0
    %93 = vmatprep.subr.mxu0 0.0
    %94 = vmatpush2.msra.mxu0 0.0
    %95 = vmatprep.subr.mxu0 0.0
    %96 = vmatpush2.msra.mxu0 0.0
    %97 = vmatprep.subr.mxu0 0.0
    %98 = vmatpush2.msra.mxu0 0.0
    %99 = vmatprep.subr.mxu0 0.0
    %100 = vmatpush2.msra.mxu0 0.0
    %101 = vmatprep.subr.mxu0 0.0
    %102 = vmatpush2.msra.mxu0 0.0
    %103 = vmatprep.subr.mxu0 0.0
    %104 = vmatpush2.msra.mxu0 0.0
    %105 = vmatprep.subr.mxu0 0.0
    %106 = vmatpush2.msra.mxu0 0.0
    %107 = vmatprep.subr.mxu0 0.0
    %108 = vmatpush2.msra.mxu0 0.0
    %109 = vmatprep.subr.mxu0 0.0
    %110 = vmatpush2.msra.mxu0 0.0
    %111 = vmatprep.subr.mxu0 0.0
    %112 = vmatpush2.msra.mxu0 0.0
    %113 = vmatprep.subr.mxu0 0.0
    %114 = vmatpush2.msra.mxu0 0.0
    %115 = vmatprep.mubr.f32.mxu0 0.0
    %116 = vmatmul.mubr.f32.gmra.mxu0 %v39
    %v117 = vpop.f32.mrf.mxu0
    %v118 = vadd.f32 %v25, %v117
    %v119 = vpop.f32.mrf.mxu0
    %120 = vmatprep.mubr.f32.mxu0 0.0
    %121 = vmatmul.mubr.f32.gmra.mxu0 %v42
    %v122 = vpop.f32.mrf.mxu0
    %v123 = vadd.f32 %v30, %v122
    %v124 = vpop.f32.mrf.mxu0
    %125 = vmatprep.mubr.f32.mxu0 0.0
    %126 = vmatmul.mubr.f32.gmra.mxu0 %v45
    %v127 = vpop.f32.mrf.mxu0
    %v128 = vadd.f32 %v35, %v127
    %v129 = vpop.f32.mrf.mxu0
    %130 = vdwg.mxu0
    %v131 = vxor.u32 %v118, 2147483648
    %v132 = vmul.f32 %v131, 1.442695
    %v133 = vpow.pop %v132
    %v134 = vadd.f32 %v133, 1.0
    %v135 = vrcp.pop %v134
    %v136 = vmul.f32 1.0, %v135
    %v137 = vmul.f32 %v136, %v123
    %v138 = vadd.f32 %v137, %v128
    %139 = vst [vmem:[#allocation2] sm:$0x7] %v138
    // Predicated region
    $region14: #{tpu_custom_call.1} parent=1 // pred_check
      _
    $region15: #{tpu_custom_call.1} parent=1 // pred_check_branch
      %141 = sbr.rel (0) target = $region17
    $region16: #{tpu_custom_call.1} parent=1 // pred_region
      %s143 = ssub.s32 64, 64
      %144 = vsyncadd [#allocation3], %s143
      %s146 = sshll.u32 [#allocation2], 4
      %s147 = int_to_ptr.vmem [resolvable:$true] %s146
      %149 = dma.vmem_to_hbm [thread:$0]  %s147, 64, %s3, [#allocation3]
    $region17: #{tpu_custom_call.1} parent=1 // pred_fallthru
      _
    // Predicated region
    $region18: #{tpu_custom_call.1} parent=1 // pred_check
      _
    $region19: #{tpu_custom_call.1} parent=1 // pred_check_branch
      %151 = sbr.rel (0) target = $region21
    $region20: #{tpu_custom_call.1} parent=1 // pred_region
      %152 = dma.done [#allocation3], 64
    $region21: #{tpu_custom_call.1} parent=1 // pred_fallthru
      _
    %153 = vsyncpa [#allocation3], 1

</llo_original>
